<compile_context>
chip_gen: v5e
topology: v5e:2x2
jax: 0.10.0
libtpu: 0.0.40
codegen_flags: <defaults>
</compile_context>

<pallas_src>
import functools

import jax
import jax.numpy as jnp
import numpy as np
from jax.experimental import pallas as pl
from jax.experimental.pallas import tpu as pltpu


def _round_up(x, m):
    return ((x + m - 1) // m) * m


# ------------------------------ Pallas kernel --------------------------------
def _affine_kernel(x_ref, w_ref, b_ref, o_ref):
    # One MXU GEMM per batch tile: (TB, K) @ (K, F) + (1, F) broadcast bias.
    o_ref[...] = (
        jnp.dot(x_ref[...], w_ref[...], preferred_element_type=jnp.float32)
        + b_ref[...]
    )


# --------------------- one-time operator folding (hoisted) --------------------
def _scatter_tensor(l_in, k_size, stride, padding, l_out):
    """S[i, k, o] = 1 iff o == i*stride - padding + k (static 0/1 numpy)."""
    i = np.arange(l_in)[:, None, None]
    k = np.arange(k_size)[None, :, None]
    o = np.arange(l_out)[None, None, :]
    return (o == i * stride - padding + k).astype(np.float32)


def _layer_affine(w, b, l_in, stride, padding):
    """ConvTranspose1d (PyTorch weight layout (Cin, Cout, K)) as a flat affine
    map on channel-major flattened vectors."""
    c_in, c_out, k_size = w.shape
    l_out = (l_in - 1) * stride - 2 * padding + k_size
    s = jnp.asarray(_scatter_tensor(l_in, k_size, stride, padding, l_out))
    # M[ci*L_in + i, co*L_out + o] = sum_k w[ci, co, k] * S[i, k, o]
    m = jnp.einsum("cdk,iko->cido", w.astype(jnp.float32), s)
    m = m.reshape(c_in * l_in, c_out * l_out)
    b_flat = jnp.repeat(b.astype(jnp.float32), l_out)  # index co*L_out + o
    return m, b_flat, l_out


def fold_decode32small(params, l0):
    """Compose the three linear layers into one (Cin*L0, 32*Lc) affine map.
    Call ONCE per parameter set; reuse the result for every decode call."""
    ma, ba_f, la = _layer_affine(params["wa"], params["ba"], l0, 2, 1)
    mb, bb_f, lb = _layer_affine(params["wb"], params["bb"], la, 2, 1)
    mc, bc_f, lc = _layer_affine(params["wc"], params["bc"], lb, 2, 0)
    w_total = ma @ mb @ mc                                   # (Cin*L0, 32*Lc)
    b_total = (ba_f @ mb + bb_f) @ mc + bc_f                 # (32*Lc,)
    return w_total, b_total.reshape(1, -1)


# ---------------------------------- wrapper -----------------------------------
@functools.partial(jax.jit, static_argnames=("target_batch_tile", "compute_dtype"))
def decode32small_pallas(x_ncl, w_total, b_total, *,
                         target_batch_tile=512, compute_dtype=jnp.float32):
    """x_ncl: (N, 4, L0) -> (N, 32, Lc) float32 (PyTorch NCL layout).

    w_total/b_total come from fold_decode32small (hoisted out of this path)."""
    n, c_in, l0 = x_ncl.shape
    k_dim, f_dim = w_total.shape
    assert k_dim == c_in * l0
    assert f_dim % 32 == 0
    lc = f_dim // 32

    # Batch tile selection:
    #  * large enough to amortise the ~0.35us/step pipeline overhead and fill
    #    the MXU M-dim (target 512 rows ~ 3.4 MiB of f32 output per step),
    #  * never larger than the 8-aligned batch (bounds padded-row writeback),
    #  * capped at ~cdiv(N,4) so the parallel grid keeps >=4 steps for
    #    megacore / v7x 2-TC sharding when the batch is big.
    tb_target = max(8, (int(target_batch_tile) // 8) * 8)
    tb = max(8, min(tb_target, _round_up(pl.cdiv(n, 4), 8)))
    n_pad = _round_up(n, tb)

    # Channel-major flatten == plain reshape of NCL input (no transpose).
    x_flat = x_ncl.reshape(n, k_dim)
    if n_pad != n:
        x_flat = jnp.pad(x_flat, ((0, n_pad - n), (0, 0)))
    x_flat = x_flat.astype(compute_dtype)
    w_in = w_total.astype(compute_dtype)
    b_in = b_total.astype(jnp.float32)          # bias + accumulation stay f32

    itemsize = jnp.dtype(compute_dtype).itemsize
    grid = (n_pad // tb,)

    cost = pl.CostEstimate(
        flops=2 * n_pad * k_dim * f_dim,
        transcendentals=0,
        bytes_accessed=(n_pad * k_dim * itemsize          # x reads
                        + k_dim * f_dim * itemsize        # resident weights
                        + f_dim * 4                       # bias
                        + n_pad * f_dim * 4),             # output writes
    )

    # Double-buffered x/out tiles + resident weights/bias + headroom.
    vmem_need = (2 * tb * (k_dim * itemsize + f_dim * 4)
                 + k_dim * f_dim * itemsize + f_dim * 4 + (2 << 20))
    vmem_limit = int(min(max(vmem_need, 32 * 1024 * 1024), 48 * 1024 * 1024))

    out_flat = pl.pallas_call(
        _affine_kernel,
        out_shape=jax.ShapeDtypeStruct((n_pad, f_dim), jnp.float32),
        grid=grid,
        in_specs=[
            pl.BlockSpec((tb, k_dim), lambda i: (i, 0)),     # batch tile
            pl.BlockSpec((k_dim, f_dim), lambda i: (0, 0)),  # resident weights
            pl.BlockSpec((1, f_dim), lambda i: (0, 0)),      # resident bias
        ],
        out_specs=pl.BlockSpec((tb, f_dim), lambda i: (i, 0)),
        compiler_params=pltpu.CompilerParams(
            dimension_semantics=("parallel",),
            vmem_limit_bytes=vmem_limit),
        cost_estimate=cost,
    )(x_flat, w_in, b_in)

    # Channel-major flat layout reshapes straight to NCL — no output transpose.
    return out_flat[:n].reshape(n, 32, lc)


def make_decode32small(params, l0, *, target_batch_tile=512,
                       compute_dtype=jnp.float32):
    """Fold the decoder once and return a per-call decode function."""
    w_total, b_total = fold_decode32small(params, l0)
    w_total = jax.block_until_ready(w_total)
    b_total = jax.block_until_ready(b_total)

    def apply(x_ncl):
        return decode32small_pallas(
            x_ncl, w_total, b_total,
            target_batch_tile=target_batch_tile, compute_dtype=compute_dtype)

    return apply


# ----------------------------- pure-JAX reference -----------------------------
def _conv_transpose1d_ref(x, w, b, stride, padding):
    # x: (N, Cin, L), w: (Cin, Cout, K) — PyTorch ConvTranspose1d semantics.
    n, _, l = x.shape
    c_out, k_size = w.shape[1], w.shape[2]
    full = (l - 1) * stride + k_size
    y = jnp.zeros((n, c_out, full), dtype=jnp.float32)
    for i in range(l):
        for k in range(k_size):
            y = y.at[:, :, i * stride + k].add(
                jnp.einsum("nc,co->no", x[:, :, i], w[:, :, k]))
    if padding > 0:
        y = y[:, :, padding:full - padding]
    return y + b[None, :, None]


def _decode_ref(x, params):
    h = _conv_transpose1d_ref(x, params["wa"], params["ba"], 2, 1)
    h = _conv_transpose1d_ref(h, params["wb"], params["bb"], 2, 1)
    h = _conv_transpose1d_ref(h, params["wc"], params["bc"], 2, 0)
    return h


if __name__ == "__main__":
    key = jax.random.PRNGKey(0)
    kx, ka, kb, kc, kba, kbb, kbc, kx2 = jax.random.split(key, 8)

    # Small shapes consistent with the module: batch=2, channels=4, length=8.
    x = jax.random.normal(kx, (2, 4, 8), dtype=jnp.float32)

    params = {
        # PyTorch ConvTranspose1d weight layout: (in_channels, out_channels, K)
        "wa": 0.1 * jax.random.normal(ka, (4, 8, 2), dtype=jnp.float32),
        "ba": 0.1 * jax.random.normal(kba, (8,), dtype=jnp.float32),
        "wb": 0.1 * jax.random.normal(kb, (8, 16, 2), dtype=jnp.float32),
        "bb": 0.1 * jax.random.normal(kbb, (16,), dtype=jnp.float32),
        "wc": 0.1 * jax.random.normal(kc, (16, 32, 2), dtype=jnp.float32),
        "bc": 0.1 * jax.random.normal(kbc, (32,), dtype=jnp.float32),
    }

    # Fold once (hoisted), decode many times.
    decode = make_decode32small(params, l0=8)

    out = jax.block_until_ready(decode(x))
    ref = _decode_ref(x, params)
    assert out.shape == (2, 32, 52), out.shape
    np.testing.assert_allclose(np.asarray(out), np.asarray(ref),
                               rtol=1e-4, atol=1e-5)

    # Second check: ragged batch (exercises >1 grid step + padded-row discard).
    x2 = jax.random.normal(kx2, (10, 4, 8), dtype=jnp.float32)
    out2 = jax.block_until_ready(decode(x2))
    ref2 = _decode_ref(x2, params)
    assert out2.shape == (10, 32, 52), out2.shape
    np.testing.assert_allclose(np.asarray(out2), np.asarray(ref2),
                               rtol=1e-4, atol=1e-5)

    print("KERNEL_OK")
</pallas_src>

<mosaic_0001>
module attributes {stable_mosaic.version = 11 : i64} {
  func.func @_affine_kernel(%arg0: i32, %arg1: memref<8x32xf32, #tpu.memory_space<vmem>>, %arg2: memref<32x1664xf32, #tpu.memory_space<vmem>>, %arg3: memref<1x1664xf32, #tpu.memory_space<vmem>>, %arg4: memref<8x1664xf32, #tpu.memory_space<vmem>>) attributes {dimension_semantics = [#tpu.dimension_semantics<parallel>], iteration_bounds = array<i64: 1>, scalar_prefetch = 0 : i64, scratch_operands = 0 : i64, tpu.core_type = #tpu.core_type<tc>, window_params = [{transform_indices = @transform_0, window_bounds = array<i64: 8, 32>}, {pipeline_mode = #tpu.pipeline_mode<synchronous>, transform_indices = @transform_1, window_bounds = array<i64: 32, 1664>}, {pipeline_mode = #tpu.pipeline_mode<synchronous>, transform_indices = @transform_2, window_bounds = array<i64: 1, 1664>}, {transform_indices = @transform_3, window_bounds = array<i64: 8, 1664>}]} {
    %c0 = arith.constant 0 : index
    %c0_0 = arith.constant 0 : index
    %0 = vector.load %arg1[%c0, %c0_0] : memref<8x32xf32, #tpu.memory_space<vmem>>, vector<8x32xf32>
    %c0_1 = arith.constant 0 : index
    %c0_2 = arith.constant 0 : index
    %1 = vector.load %arg2[%c0_1, %c0_2] : memref<32x1664xf32, #tpu.memory_space<vmem>>, vector<32x1664xf32>
    %cst = arith.constant dense<0.000000e+00> : vector<8x1664xf32>
    %2 = tpu.matmul %0, %1, %cst {dimension_numbers = #tpu.dot_dimension_numbers<[1], [0], [0], [1], [0, 0, 1, 1], [], []>} : vector<8x32xf32>, vector<32x1664xf32>, vector<8x1664xf32> -> vector<8x1664xf32>
    %c0_3 = arith.constant 0 : index
    %c0_4 = arith.constant 0 : index
    %3 = vector.load %arg3[%c0_3, %c0_4] : memref<1x1664xf32, #tpu.memory_space<vmem>>, vector<1x1664xf32>
    %4 = vector.broadcast %3 : vector<1x1664xf32> to vector<8x1664xf32>
    %5 = arith.addf %2, %4 : vector<8x1664xf32>
    %c0_5 = arith.constant 0 : index
    %c0_6 = arith.constant 0 : index
    %6 = vector.load %arg4[%c0_5, %c0_6] : memref<8x1664xf32, #tpu.memory_space<vmem>>, vector<8x1664xf32>
    tpu.vector_store %arg4[%c0_5, %c0_6], %5 {strides = array<i32>} : memref<8x1664xf32, #tpu.memory_space<vmem>>, vector<8x1664xf32>,
    return
  }
  func.func @transform_0(%arg0: i32) -> (i32, i32) {
    %c0_i32 = arith.constant 0 : i32
    %c0_i32_0 = arith.constant 0 : i32
    return %arg0, %c0_i32 : i32, i32
  }
  func.func @transform_1(%arg0: i32) -> (i32, i32) {
    %c0_i32 = arith.constant 0 : i32
    %c0_i32_0 = arith.constant 0 : i32
    %c0_i32_1 = arith.constant 0 : i32
    return %c0_i32, %c0_i32_0 : i32, i32
  }
  func.func @transform_2(%arg0: i32) -> (i32, i32) {
    %c0_i32 = arith.constant 0 : i32
    %c0_i32_0 = arith.constant 0 : i32
    %c0_i32_1 = arith.constant 0 : i32
    return %c0_i32, %c0_i32_0 : i32, i32
  }
  func.func @transform_3(%arg0: i32) -> (i32, i32) {
    %c0_i32 = arith.constant 0 : i32
    %c0_i32_0 = arith.constant 0 : i32
    return %arg0, %c0_i32 : i32, i32
  }
}

</mosaic_0001>

<llo_original>
// kernel: decode32small_pallas.1
$region0: #{decode32small_pallas.1}
  #allocation0 [shape = 'u32[]', space=smem, size = 0x4, offset = 0x4, fixed_abs, tag = 'smem constant byte address 0x4 - core index']
  #allocation1 [shape = 'u32[72,128]{1,0:T(1,128)}', space=vmem, size = 0x9000, scoped, tag = 'internal scratch']
  %s0 = inlined_call_operand.vmem [shape: f32[8,32], index: 0, kind: input, shape index: {}]
  %s1 = inlined_call_operand.hbm [shape: f32[32,1664], index: 1, kind: input, shape index: {}]
  %s2 = inlined_call_operand.vmem [shape: f32[1,1664], index: 2, kind: input, shape index: {}]
  %s3 = inlined_call_operand.vmem [shape: f32[8,1664], index: 3, kind: output, shape index: {}]
  %s4 = sld [smem:[#allocation0]]
  $region26: #{decode32small_pallas.1} parent=0
    _
  %s6 = ssub.s32 1, %s4
  %s7 = scalar_select 0, %s6, %s4
  $region1: #{decode32small_pallas.1} parent=0
    #allocation2 [shape = 'u8[212992]{0}', space=vmem, size = 0x34000, scoped, tag = 'input window, operand 1, single buffered']
    #allocation3 [shape = 's32[1]{0}', space=sflag, size = 0x4, scoped, tag = 'scoped memory for decode32small_pallas.1']
    %8 = vsyncpa [#allocation3], 0
    // Predicated region
    $region2: #{decode32small_pallas.1} parent=1 // pred_check
      _
    $region3: #{decode32small_pallas.1} parent=1 // pred_check_branch
      %10 = sbr.rel (0) target = $region5
    $region4: #{decode32small_pallas.1} parent=1 // pred_region
      _
    $region5: #{decode32small_pallas.1} parent=1 // pred_fallthru
      _
    // Predicated region
    $region6: #{decode32small_pallas.1} parent=1 // pred_check
      _
    $region7: #{decode32small_pallas.1} parent=1 // pred_check_branch
      %12 = sbr.rel (0) target = $region9
    $region8: #{decode32small_pallas.1} parent=1 // pred_region
      %14 = vsyncadd [#allocation3], 0
      %s15 = sshll.u32 %s1, 4
      %s16 = int_to_ptr.hbm [resolvable:$true] %s15
      %s17 = sshll.u32 [#allocation2], 4
      %s18 = int_to_ptr.vmem [resolvable:$true] %s17
      %23 = dma.hbm_to_vmem [thread:$0]  %s16, 6656, %s18, [#allocation3], 1664, 1664, 104
    $region9: #{decode32small_pallas.1} parent=1 // pred_fallthru
      _
    // Predicated region
    $region10: #{decode32small_pallas.1} parent=1 // pred_check
      _
    $region11: #{decode32small_pallas.1} parent=1 // pred_check_branch
      %25 = sbr.rel (0) target = $region13
    $region12: #{decode32small_pallas.1} parent=1 // pred_region
      _
    $region13: #{decode32small_pallas.1} parent=1 // pred_fallthru
      _
    // Predicated region
    $region14: #{decode32small_pallas.1} parent=1 // pred_check
      _
    $region15: #{decode32small_pallas.1} parent=1 // pred_check_branch
      %27 = sbr.rel (0) target = $region17
    $region16: #{decode32small_pallas.1} parent=1 // pred_region
      %29 = dma.done [#allocation3], 6656
    $region17: #{decode32small_pallas.1} parent=1 // pred_fallthru
      _
    %v30 = vld [vmem:[%s0] sm:$0xff]
    %v31 = vld [vmem:[#allocation2] sm:$0xff]
    %v32 = vld [vmem:[#allocation2 + $0x8] sm:$0xff]
    %v33 = vld [vmem:[#allocation2 + $0x10] sm:$0xff]
    %v34 = vld [vmem:[#allocation2 + $0x18] sm:$0xff]
    %v35 = vld [vmem:[#allocation2 + $0x20] sm:$0xff]
    %v36 = vld [vmem:[#allocation2 + $0x28] sm:$0xff]
    %v37 = vld [vmem:[#allocation2 + $0x30] sm:$0xff]
    %v38 = vld [vmem:[#allocation2 + $0x38] sm:$0xff]
    %v39 = vld [vmem:[#allocation2 + $0x40] sm:$0xff]
    %v40 = vld [vmem:[#allocation2 + $0x48] sm:$0xff]
    %v41 = vld [vmem:[#allocation2 + $0x50] sm:$0xff]
    %v42 = vld [vmem:[#allocation2 + $0x58] sm:$0xff]
    %v43 = vld [vmem:[#allocation2 + $0x60] sm:$0xff]
    %v44 = vld [vmem:[#allocation2 + $0x68] sm:$0xff]
    %v45 = vld [vmem:[#allocation2 + $0x70] sm:$0xff]
    %v46 = vld [vmem:[#allocation2 + $0x78] sm:$0xff]
    %v47 = vld [vmem:[#allocation2 + $0x80] sm:$0xff]
    %v48 = vld [vmem:[#allocation2 + $0x88] sm:$0xff]
    %v49 = vld [vmem:[#allocation2 + $0x90] sm:$0xff]
    %v50 = vld [vmem:[#allocation2 + $0x98] sm:$0xff]
    %v51 = vld [vmem:[#allocation2 + $0xa0] sm:$0xff]
    %v52 = vld [vmem:[#allocation2 + $0xa8] sm:$0xff]
    %v53 = vld [vmem:[#allocation2 + $0xb0] sm:$0xff]
    %v54 = vld [vmem:[#allocation2 + $0xb8] sm:$0xff]
    %v55 = vld [vmem:[#allocation2 + $0xc0] sm:$0xff]
    %v56 = vld [vmem:[#allocation2 + $0xc8] sm:$0xff]
    %v57 = vld [vmem:[#allocation2 + $0xd0] sm:$0xff]
    %v58 = vld [vmem:[#allocation2 + $0xd8] sm:$0xff]
    %v59 = vld [vmem:[#allocation2 + $0xe0] sm:$0xff]
    %v60 = vld [vmem:[#allocation2 + $0xe8] sm:$0xff]
    %v61 = vld [vmem:[#allocation2 + $0xf0] sm:$0xff]
    %v62 = vld [vmem:[#allocation2 + $0xf8] sm:$0xff]
    %v63 = vld [vmem:[#allocation2 + $0x100] sm:$0xff]
    %v64 = vld [vmem:[#allocation2 + $0x108] sm:$0xff]
    %v65 = vld [vmem:[#allocation2 + $0x110] sm:$0xff]
    %v66 = vld [vmem:[#allocation2 + $0x118] sm:$0xff]
    %v67 = vld [vmem:[#allocation2 + $0x120] sm:$0xff]
    %v68 = vld [vmem:[#allocation2 + $0x128] sm:$0xff]
    %v69 = vld [vmem:[#allocation2 + $0x130] sm:$0xff]
    %v70 = vld [vmem:[#allocation2 + $0x138] sm:$0xff]
    %v71 = vld [vmem:[#allocation2 + $0x140] sm:$0xff]
    %v72 = vld [vmem:[#allocation2 + $0x148] sm:$0xff]
    %v73 = vld [vmem:[#allocation2 + $0x150] sm:$0xff]
    %v74 = vld [vmem:[#allocation2 + $0x158] sm:$0xff]
    %v75 = vld [vmem:[#allocation2 + $0x160] sm:$0xff]
    %v76 = vld [vmem:[#allocation2 + $0x168] sm:$0xff]
    %v77 = vld [vmem:[#allocation2 + $0x170] sm:$0xff]
    %v78 = vld [vmem:[#allocation2 + $0x178] sm:$0xff]
    %v79 = vld [vmem:[#allocation2 + $0x180] sm:$0xff]
    %v80 = vld [vmem:[#allocation2 + $0x188] sm:$0xff]
    %v81 = vld [vmem:[#allocation2 + $0x190] sm:$0xff]
    %v82 = vld [vmem:[#allocation2 + $0x198] sm:$0xff]
    %v83 = vld [vmem:[%s2] sm:$0xff]
    %v84 = vld [vmem:[%s2 + $0x8] sm:$0x1f]
    %v87 = vperm.slane %v83, 0
    %v88 = vperm.slane %v83, 1
    %v89 = vperm.slane %v83, 2
    %v90 = vperm.slane %v83, 3
    %v91 = vperm.slane %v83, 4
    %v92 = vperm.slane %v83, 5
    %v93 = vperm.slane %v83, 6
    %v94 = vperm.slane %v83, 7
    %v95 = vperm.slane %v84, 0
    %v96 = vperm.slane %v84, 1
    %v97 = vperm.slane %v84, 2
    %v98 = vperm.slane %v84, 3
    %v99 = vperm.slane %v84, 4
    %vm113 = vcmask 261120
    %v115 = vsel %vm113, %v30, 0
    %117 = vmatpush.msra.mxu0 0.0
    %118 = vmatpush.msra.mxu0 0.0
    %119 = vmatpush.msra.mxu0 0.0
    %120 = vmatpush.msra.mxu0 0.0
    %121 = vmatpush.msra.mxu0 0.0
    %122 = vmatpush.msra.mxu0 0.0
    %123 = vmatpush.msra.mxu0 0.0
    %124 = vmatpush.msra.mxu0 0.0
    %125 = vmatpush.msra.mxu0 0.0
    %126 = vmatpush.msra.mxu0 0.0
    %127 = vmatpush.msra.mxu0 0.0
    %128 = vmatpush.msra.mxu0 0.0
    %129 = vmatpush.msra.mxu0 %v70
    %130 = vmatpush.msra.mxu0 %v57
    %131 = vmatpush.msra.mxu0 %v44
    %132 = vmatpush.msra.mxu0 %v31
    %133 = vmatmul.f32.gmra.mxu0 %v115
    %v134 = vpop.f32.mrf.mxu0
    %v135 = vadd.f32 %v87, %v134
    %136 = vdwg.mxu0
    %137 = vmatpush.msra.mxu0 0.0
    %138 = vmatpush.msra.mxu0 0.0
    %139 = vmatpush.msra.mxu0 0.0
    %140 = vmatpush.msra.mxu0 0.0
    %141 = vmatpush.msra.mxu0 0.0
    %142 = vmatpush.msra.mxu0 0.0
    %143 = vmatpush.msra.mxu0 0.0
    %144 = vmatpush.msra.mxu0 0.0
    %145 = vmatpush.msra.mxu0 0.0
    %146 = vmatpush.msra.mxu0 0.0
    %147 = vmatpush.msra.mxu0 0.0
    %148 = vmatpush.msra.mxu0 0.0
    %149 = vmatpush.msra.mxu0 %v71
    %150 = vmatpush.msra.mxu0 %v58
    %151 = vmatpush.msra.mxu0 %v45
    %152 = vmatpush.msra.mxu0 %v32
    %153 = vmatmul.f32.gmra.mxu0 %v115
    %v154 = vpop.f32.mrf.mxu0
    %v155 = vadd.f32 %v88, %v154
    %156 = vdwg.mxu0
    %157 = vmatpush.msra.mxu0 0.0
    %158 = vmatpush.msra.mxu0 0.0
    %159 = vmatpush.msra.mxu0 0.0
    %160 = vmatpush.msra.mxu0 0.0
    %161 = vmatpush.msra.mxu0 0.0
    %162 = vmatpush.msra.mxu0 0.0
    %163 = vmatpush.msra.mxu0 0.0
    %164 = vmatpush.msra.mxu0 0.0
    %165 = vmatpush.msra.mxu0 0.0
    %166 = vmatpush.msra.mxu0 0.0
    %167 = vmatpush.msra.mxu0 0.0
    %168 = vmatpush.msra.mxu0 0.0
    %169 = vmatpush.msra.mxu0 %v72
    %170 = vmatpush.msra.mxu0 %v59
    %171 = vmatpush.msra.mxu0 %v46
    %172 = vmatpush.msra.mxu0 %v33
    %173 = vmatmul.f32.gmra.mxu0 %v115
    %v174 = vpop.f32.mrf.mxu0
    %v175 = vadd.f32 %v89, %v174
    %176 = vdwg.mxu0
    %177 = vmatpush.msra.mxu0 0.0
    %178 = vmatpush.msra.mxu0 0.0
    %179 = vmatpush.msra.mxu0 0.0
    %180 = vmatpush.msra.mxu0 0.0
    %181 = vmatpush.msra.mxu0 0.0
    %182 = vmatpush.msra.mxu0 0.0
    %183 = vmatpush.msra.mxu0 0.0
    %184 = vmatpush.msra.mxu0 0.0
    %185 = vmatpush.msra.mxu0 0.0
    %186 = vmatpush.msra.mxu0 0.0
    %187 = vmatpush.msra.mxu0 0.0
    %188 = vmatpush.msra.mxu0 0.0
    %189 = vmatpush.msra.mxu0 %v73
    %190 = vmatpush.msra.mxu0 %v60
    %191 = vmatpush.msra.mxu0 %v47
    %192 = vmatpush.msra.mxu0 %v34
    %193 = vmatmul.f32.gmra.mxu0 %v115
    %v194 = vpop.f32.mrf.mxu0
    %v195 = vadd.f32 %v90, %v194
    %196 = vdwg.mxu0
    %197 = vmatpush.msra.mxu0 0.0
    %198 = vmatpush.msra.mxu0 0.0
    %199 = vmatpush.msra.mxu0 0.0
    %200 = vmatpush.msra.mxu0 0.0
    %201 = vmatpush.msra.mxu0 0.0
    %202 = vmatpush.msra.mxu0 0.0
    %203 = vmatpush.msra.mxu0 0.0
    %204 = vmatpush.msra.mxu0 0.0
    %205 = vmatpush.msra.mxu0 0.0
    %206 = vmatpush.msra.mxu0 0.0
    %207 = vmatpush.msra.mxu0 0.0
    %208 = vmatpush.msra.mxu0 0.0
    %209 = vmatpush.msra.mxu0 %v74
    %210 = vmatpush.msra.mxu0 %v61
    %211 = vmatpush.msra.mxu0 %v48
    %212 = vmatpush.msra.mxu0 %v35
    %213 = vmatmul.f32.gmra.mxu0 %v115
    %v214 = vpop.f32.mrf.mxu0
    %v215 = vadd.f32 %v91, %v214
    %216 = vdwg.mxu0
    %217 = vmatpush.msra.mxu0 0.0
    %218 = vmatpush.msra.mxu0 0.0
    %219 = vmatpush.msra.mxu0 0.0
    %220 = vmatpush.msra.mxu0 0.0
    %221 = vmatpush.msra.mxu0 0.0
    %222 = vmatpush.msra.mxu0 0.0
    %223 = vmatpush.msra.mxu0 0.0
    %224 = vmatpush.msra.mxu0 0.0
    %225 = vmatpush.msra.mxu0 0.0
    %226 = vmatpush.msra.mxu0 0.0
    %227 = vmatpush.msra.mxu0 0.0
    %228 = vmatpush.msra.mxu0 0.0
    %229 = vmatpush.msra.mxu0 %v75
    %230 = vmatpush.msra.mxu0 %v62
    %231 = vmatpush.msra.mxu0 %v49
    %232 = vmatpush.msra.mxu0 %v36
    %233 = vmatmul.f32.gmra.mxu0 %v115
    %v234 = vpop.f32.mrf.mxu0
    %v235 = vadd.f32 %v92, %v234
    %236 = vdwg.mxu0
    %237 = vmatpush.msra.mxu0 0.0
    %238 = vmatpush.msra.mxu0 0.0
    %239 = vmatpush.msra.mxu0 0.0
    %240 = vmatpush.msra.mxu0 0.0
    %241 = vmatpush.msra.mxu0 0.0
    %242 = vmatpush.msra.mxu0 0.0
    %243 = vmatpush.msra.mxu0 0.0
    %244 = vmatpush.msra.mxu0 0.0
    %245 = vmatpush.msra.mxu0 0.0
    %246 = vmatpush.msra.mxu0 0.0
    %247 = vmatpush.msra.mxu0 0.0
    %248 = vmatpush.msra.mxu0 0.0
    %249 = vmatpush.msra.mxu0 %v76
    %250 = vmatpush.msra.mxu0 %v63
    %251 = vmatpush.msra.mxu0 %v50
    %252 = vmatpush.msra.mxu0 %v37
    %253 = vmatmul.f32.gmra.mxu0 %v115
    %v254 = vpop.f32.mrf.mxu0
    %v255 = vadd.f32 %v93, %v254
    %256 = vdwg.mxu0
    %257 = vmatpush.msra.mxu0 0.0
    %258 = vmatpush.msra.mxu0 0.0
    %259 = vmatpush.msra.mxu0 0.0
    %260 = vmatpush.msra.mxu0 0.0
    %261 = vmatpush.msra.mxu0 0.0
    %262 = vmatpush.msra.mxu0 0.0
    %263 = vmatpush.msra.mxu0 0.0
    %264 = vmatpush.msra.mxu0 0.0
    %265 = vmatpush.msra.mxu0 0.0
    %266 = vmatpush.msra.mxu0 0.0
    %267 = vmatpush.msra.mxu0 0.0
    %268 = vmatpush.msra.mxu0 0.0
    %269 = vmatpush.msra.mxu0 %v77
    %270 = vmatpush.msra.mxu0 %v64
    %271 = vmatpush.msra.mxu0 %v51
    %272 = vmatpush.msra.mxu0 %v38
    %273 = vmatmul.f32.gmra.mxu0 %v115
    %v274 = vpop.f32.mrf.mxu0
    %v275 = vadd.f32 %v94, %v274
    %276 = vdwg.mxu0
    %277 = vmatpush.msra.mxu0 0.0
    %278 = vmatpush.msra.mxu0 0.0
    %279 = vmatpush.msra.mxu0 0.0
    %280 = vmatpush.msra.mxu0 0.0
    %281 = vmatpush.msra.mxu0 0.0
    %282 = vmatpush.msra.mxu0 0.0
    %283 = vmatpush.msra.mxu0 0.0
    %284 = vmatpush.msra.mxu0 0.0
    %285 = vmatpush.msra.mxu0 0.0
    %286 = vmatpush.msra.mxu0 0.0
    %287 = vmatpush.msra.mxu0 0.0
    %288 = vmatpush.msra.mxu0 0.0
    %289 = vmatpush.msra.mxu0 %v78
    %290 = vmatpush.msra.mxu0 %v65
    %291 = vmatpush.msra.mxu0 %v52
    %292 = vmatpush.msra.mxu0 %v39
    %293 = vmatmul.f32.gmra.mxu0 %v115
    %v294 = vpop.f32.mrf.mxu0
    %v295 = vadd.f32 %v95, %v294
    %296 = vdwg.mxu0
    %297 = vmatpush.msra.mxu0 0.0
    %298 = vmatpush.msra.mxu0 0.0
    %299 = vmatpush.msra.mxu0 0.0
    %300 = vmatpush.msra.mxu0 0.0
    %301 = vmatpush.msra.mxu0 0.0
    %302 = vmatpush.msra.mxu0 0.0
    %303 = vmatpush.msra.mxu0 0.0
    %304 = vmatpush.msra.mxu0 0.0
    %305 = vmatpush.msra.mxu0 0.0
    %306 = vmatpush.msra.mxu0 0.0
    %307 = vmatpush.msra.mxu0 0.0
    %308 = vmatpush.msra.mxu0 0.0
    %309 = vmatpush.msra.mxu0 %v79
    %310 = vmatpush.msra.mxu0 %v66
    %311 = vmatpush.msra.mxu0 %v53
    %312 = vmatpush.msra.mxu0 %v40
    %313 = vmatmul.f32.gmra.mxu0 %v115
    %v314 = vpop.f32.mrf.mxu0
    %v315 = vadd.f32 %v96, %v314
    %316 = vdwg.mxu0
    %317 = vmatpush.msra.mxu0 0.0
    %318 = vmatpush.msra.mxu0 0.0
    %319 = vmatpush.msra.mxu0 0.0
    %320 = vmatpush.msra.mxu0 0.0
    %321 = vmatpush.msra.mxu0 0.0
    %322 = vmatpush.msra.mxu0 0.0
    %323 = vmatpush.msra.mxu0 0.0
    %324 = vmatpush.msra.mxu0 0.0
    %325 = vmatpush.msra.mxu0 0.0
    %326 = vmatpush.msra.mxu0 0.0
    %327 = vmatpush.msra.mxu0 0.0
    %328 = vmatpush.msra.mxu0 0.0
    %329 = vmatpush.msra.mxu0 %v80
    %330 = vmatpush.msra.mxu0 %v67
    %331 = vmatpush.msra.mxu0 %v54
    %332 = vmatpush.msra.mxu0 %v41
    %333 = vmatmul.f32.gmra.mxu0 %v115
    %v334 = vpop.f32.mrf.mxu0
    %v335 = vadd.f32 %v97, %v334
    %336 = vdwg.mxu0
    %337 = vmatpush.msra.mxu0 0.0
    %338 = vmatpush.msra.mxu0 0.0
    %339 = vmatpush.msra.mxu0 0.0
    %340 = vmatpush.msra.mxu0 0.0
    %341 = vmatpush.msra.mxu0 0.0
    %342 = vmatpush.msra.mxu0 0.0
    %343 = vmatpush.msra.mxu0 0.0
    %344 = vmatpush.msra.mxu0 0.0
    %345 = vmatpush.msra.mxu0 0.0
    %346 = vmatpush.msra.mxu0 0.0
    %347 = vmatpush.msra.mxu0 0.0
    %348 = vmatpush.msra.mxu0 0.0
    %349 = vmatpush.msra.mxu0 %v81
    %350 = vmatpush.msra.mxu0 %v68
    %351 = vmatpush.msra.mxu0 %v55
    %352 = vmatpush.msra.mxu0 %v42
    %353 = vmatmul.f32.gmra.mxu0 %v115
    %v354 = vpop.f32.mrf.mxu0
    %v355 = vadd.f32 %v98, %v354
    %356 = vdwg.mxu0
    %357 = vmatpush.msra.mxu0 0.0
    %358 = vmatpush.msra.mxu0 0.0
    %359 = vmatpush.msra.mxu0 0.0
    %360 = vmatpush.msra.mxu0 0.0
    %361 = vmatpush.msra.mxu0 0.0
    %362 = vmatpush.msra.mxu0 0.0
    %363 = vmatpush.msra.mxu0 0.0
    %364 = vmatpush.msra.mxu0 0.0
    %365 = vmatpush.msra.mxu0 0.0
    %366 = vmatpush.msra.mxu0 0.0
    %367 = vmatpush.msra.mxu0 0.0
    %368 = vmatpush.msra.mxu0 0.0
    %369 = vmatpush.msra.mxu0 %v82
    %370 = vmatpush.msra.mxu0 %v69
    %371 = vmatpush.msra.mxu0 %v56
    %372 = vmatpush.msra.mxu0 %v43
    %373 = vmatmul.f32.gmra.mxu0 %v115
    %v374 = vpop.f32.mrf.mxu0
    %v375 = vadd.f32 %v99, %v374
    %376 = vdwg.mxu0
    %377 = vst [vmem:[%s3] sm:$0xff] %v135
    %378 = vst [vmem:[%s3 + $0x8] sm:$0xff] %v155
    %379 = vst [vmem:[%s3 + $0x10] sm:$0xff] %v175
    %380 = vst [vmem:[%s3 + $0x18] sm:$0xff] %v195
    %381 = vst [vmem:[%s3 + $0x20] sm:$0xff] %v215
    %382 = vst [vmem:[%s3 + $0x28] sm:$0xff] %v235
    %383 = vst [vmem:[%s3 + $0x30] sm:$0xff] %v255
    %384 = vst [vmem:[%s3 + $0x38] sm:$0xff] %v275
    %385 = vst [vmem:[%s3 + $0x40] sm:$0xff] %v295
    %386 = vst [vmem:[%s3 + $0x48] sm:$0xff] %v315
    %387 = vst [vmem:[%s3 + $0x50] sm:$0xff] %v335
    %388 = vst [vmem:[%s3 + $0x58] sm:$0xff] %v355
    %389 = vst [vmem:[%s3 + $0x60] sm:$0xff] %v375
    // Predicated region
    $region18: #{decode32small_pallas.1} parent=1 // pred_check
      _
    $region19: #{decode32small_pallas.1} parent=1 // pred_check_branch
      %391 = sbr.rel (0) target = $region21
    $region20: #{decode32small_pallas.1} parent=1 // pred_region
      _
    $region21: #{decode32small_pallas.1} parent=1 // pred_fallthru
      _
    // Predicated region
    $region22: #{decode32small_pallas.1} parent=1 // pred_check
      _
    $region23: #{decode32small_pallas.1} parent=1 // pred_check_branch
      %393 = sbr.rel (0) target = $region25
    $region24: #{decode32small_pallas.1} parent=1 // pred_region
      _
    $region25: #{decode32small_pallas.1} parent=1 // pred_fallthru
      _
    %394 = vsyncpa [#allocation3], 1

</llo_original>
